<compile_context>
chip_gen: v7x
topology: tpu7x:2x2x1
jax: 0.10.0
libtpu: 0.0.40
codegen_flags: <defaults>
</compile_context>

<pallas_src>
import functools

import jax
import jax.numpy as jnp
import numpy as np
from jax.experimental import pallas as pl
from jax.experimental.pallas import tpu as pltpu


def _se_layer_kernel(x_ref, w1t_ref, w2t_ref, o_ref, *, inv_length):
    x = x_ref[...].astype(jnp.float32)                      # (TB, C, L), f32 compute
    # Global average pool over L (lane-axis reduction); divide by the true L.
    y = jnp.sum(x, axis=-1) * inv_length                    # (TB, C)
    # fc1 -> relu -> fc2 -> sigmoid, batched over TB, lane-dense on C / H.
    h = jnp.dot(y, w1t_ref[...], preferred_element_type=jnp.float32)   # (TB, H)
    h = jnp.maximum(h, 0.0)
    s = jnp.dot(h, w2t_ref[...], preferred_element_type=jnp.float32)   # (TB, C)
    s = jax.nn.sigmoid(s)
    # Gate the input and store in the original I/O dtype.
    o_ref[...] = (x * s[:, :, None]).astype(o_ref.dtype)


def _choose_batch_tile(b, c, l, itemsize, target_bytes=1 << 20, min_steps=4):
    """Pick TB so a block is ~target_bytes, but keep >= min_steps grid steps."""
    per_sample = c * l * itemsize
    tb = max(1, target_bytes // per_sample)
    tb = min(tb, max(1, -(-b // min_steps)))
    return int(min(tb, b))


def se_layer_1d(x, w1, w2, *, batch_tile=None):
    """SELayer1D forward.

    x  : (B, C, L)  input (f32 or bf16; bf16 halves HBM traffic)
    w1 : (C//r, C)  nn.Linear(C, C//r, bias=False).weight
    w2 : (C, C//r)  nn.Linear(C//r, C, bias=False).weight
    """
    B, C, L = x.shape
    Cr = w1.shape[0]
    assert w1.shape == (Cr, C) and w2.shape == (C, Cr) and Cr >= 1

    # Pad hidden dim up to a sublane multiple; zero padding is exact
    # (relu(0) == 0 and the zero rows of w2t contribute nothing).
    H = max(8, -(-Cr // 8) * 8)
    w1t = jnp.zeros((C, H), jnp.float32).at[:, :Cr].set(w1.T.astype(jnp.float32))
    w2t = jnp.zeros((H, C), jnp.float32).at[:Cr, :].set(w2.T.astype(jnp.float32))

    TB = batch_tile if batch_tile is not None else _choose_batch_tile(
        B, C, L, jnp.dtype(x.dtype).itemsize)
    grid = (pl.cdiv(B, TB),)

    kernel = functools.partial(_se_layer_kernel, inv_length=1.0 / L)

    return pl.pallas_call(
        kernel,
        out_shape=jax.ShapeDtypeStruct((B, C, L), x.dtype),
        grid_spec=pltpu.PrefetchScalarGridSpec(
            num_scalar_prefetch=0,
            grid=grid,
            in_specs=[
                pl.BlockSpec((TB, C, L), lambda b: (b, 0, 0)),   # x (batch tile)
                pl.BlockSpec((C, H), lambda b: (0, 0)),          # fc1 weight^T (padded)
                pl.BlockSpec((H, C), lambda b: (0, 0)),          # fc2 weight^T (padded)
            ],
            out_specs=pl.BlockSpec((TB, C, L), lambda b: (b, 0, 0)),
        ),
        compiler_params=pltpu.CompilerParams(
            dimension_semantics=("parallel",)),
    )(x, w1t, w2t)


def ref_forward(x, w1, w2):
    # Pure-JAX reference (matches the PyTorch forward exactly).
    xf = x.astype(jnp.float32)
    y = jnp.mean(xf, axis=2)                          # (B, C)
    h = jnp.maximum(y @ w1.T, 0.0)                    # (B, C//r)
    s = jax.nn.sigmoid(h @ w2.T)                      # (B, C)
    return (xf * s[:, :, None]).astype(x.dtype)


if __name__ == "__main__":
    key = jax.random.PRNGKey(0)
    B, C, L = 8, 32, 256
    reduction = 16
    Cr = C // reduction                               # 2

    kx, k1, k2 = jax.random.split(key, 3)
    x = jax.random.normal(kx, (B, C, L), jnp.float32)
    # nn.Linear weights (bias=False):  fc1: (C//r, C),  fc2: (C, C//r)
    w1 = 0.3 * jax.random.normal(k1, (Cr, C), jnp.float32)
    w2 = 0.3 * jax.random.normal(k2, (C, Cr), jnp.float32)

    # f32 I/O path
    out = se_layer_1d(x, w1, w2)
    jax.block_until_ready(out)
    np.testing.assert_allclose(np.asarray(out), np.asarray(ref_forward(x, w1, w2)),
                               rtol=1e-5, atol=1e-5)

    # bf16 I/O path (halves HBM traffic; gate math stays f32 in-kernel)
    x_bf16 = x.astype(jnp.bfloat16)
    out_bf16 = se_layer_1d(x_bf16, w1, w2)
    jax.block_until_ready(out_bf16)
    np.testing.assert_allclose(
        np.asarray(out_bf16.astype(jnp.float32)),
        np.asarray(ref_forward(x_bf16, w1, w2).astype(jnp.float32)),
        rtol=2e-2, atol=2e-2)

    print("KERNEL_OK")
</pallas_src>

<mosaic_0001>
module attributes {stable_mosaic.version = 11 : i64} {
  func.func @_se_layer_kernel(%arg0: i32, %arg1: memref<2x32x256xf32, #tpu.memory_space<vmem>>, %arg2: memref<32x8xf32, #tpu.memory_space<vmem>>, %arg3: memref<8x32xf32, #tpu.memory_space<vmem>>, %arg4: memref<2x32x256xf32, #tpu.memory_space<vmem>>) attributes {dimension_semantics = [#tpu.dimension_semantics<parallel>], iteration_bounds = array<i64: 4>, scalar_prefetch = 0 : i64, scratch_operands = 0 : i64, tpu.core_type = #tpu.core_type<tc>, window_params = [{transform_indices = @transform_0, window_bounds = array<i64: 2, 32, 256>}, {pipeline_mode = #tpu.pipeline_mode<synchronous>, transform_indices = @transform_1, window_bounds = array<i64: 32, 8>}, {pipeline_mode = #tpu.pipeline_mode<synchronous>, transform_indices = @transform_2, window_bounds = array<i64: 8, 32>}, {transform_indices = @transform_3, window_bounds = array<i64: 2, 32, 256>}]} {
    %c0 = arith.constant 0 : index
    %c0_0 = arith.constant 0 : index
    %c0_1 = arith.constant 0 : index
    %0 = vector.load %arg1[%c0, %c0_0, %c0_1] : memref<2x32x256xf32, #tpu.memory_space<vmem>>, vector<2x32x256xf32>
    %cst = arith.constant dense<0.000000e+00> : vector<2x32xf32>
    %1 = vector.multi_reduction <add>, %0, %cst [2] : vector<2x32x256xf32> to vector<2x32xf32>
    %cst_2 = arith.constant 3.906250e-03 : f32
    %2 = vector.broadcast %cst_2 : f32 to vector<2x32xf32>
    %3 = arith.mulf %1, %2 : vector<2x32xf32>
    %c0_3 = arith.constant 0 : index
    %c0_4 = arith.constant 0 : index
    %4 = vector.load %arg2[%c0_3, %c0_4] : memref<32x8xf32, #tpu.memory_space<vmem>>, vector<32x8xf32>
    %cst_5 = arith.constant dense<0.000000e+00> : vector<2x8xf32>
    %5 = tpu.matmul %3, %4, %cst_5 {dimension_numbers = #tpu.dot_dimension_numbers<[1], [0], [0], [1], [0, 0, 1, 1], [], []>} : vector<2x32xf32>, vector<32x8xf32>, vector<2x8xf32> -> vector<2x8xf32>
    %cst_6 = arith.constant 0.000000e+00 : f32
    %6 = vector.broadcast %cst_6 : f32 to vector<2x8xf32>
    %7 = arith.maximumf %5, %6 : vector<2x8xf32>
    %c0_7 = arith.constant 0 : index
    %c0_8 = arith.constant 0 : index
    %8 = vector.load %arg3[%c0_7, %c0_8] : memref<8x32xf32, #tpu.memory_space<vmem>>, vector<8x32xf32>
    %cst_9 = arith.constant dense<0.000000e+00> : vector<2x32xf32>
    %9 = tpu.matmul %7, %8, %cst_9 {dimension_numbers = #tpu.dot_dimension_numbers<[1], [0], [0], [1], [0, 0, 1, 1], [], []>} : vector<2x8xf32>, vector<8x32xf32>, vector<2x32xf32> -> vector<2x32xf32>
    %10 = arith.negf %9 : vector<2x32xf32>
    %11 = math.exp %10 : vector<2x32xf32>
    %cst_10 = arith.constant 1.000000e+00 : f32
    %12 = vector.broadcast %cst_10 : f32 to vector<2x32xf32>
    %13 = arith.addf %12, %11 : vector<2x32xf32>
    %14 = arith.divf %12, %13 : vector<2x32xf32>
    %15 = vector.shape_cast %14 : vector<2x32xf32> to vector<2x32x1xf32>
    %16 = vector.broadcast %15 : vector<2x32x1xf32> to vector<2x32x256xf32>
    %17 = arith.mulf %0, %16 : vector<2x32x256xf32>
    %c0_11 = arith.constant 0 : index
    %c0_12 = arith.constant 0 : index
    %c0_13 = arith.constant 0 : index
    %18 = vector.load %arg4[%c0_11, %c0_12, %c0_13] : memref<2x32x256xf32, #tpu.memory_space<vmem>>, vector<2x32x256xf32>
    tpu.vector_store %arg4[%c0_11, %c0_12, %c0_13], %17 {strides = array<i32>} : memref<2x32x256xf32, #tpu.memory_space<vmem>>, vector<2x32x256xf32>,
    return
  }
  func.func @transform_0(%arg0: i32) -> (i32, i32, i32) {
    %c0_i32 = arith.constant 0 : i32
    %c0_i32_0 = arith.constant 0 : i32
    %c0_i32_1 = arith.constant 0 : i32
    return %arg0, %c0_i32, %c0_i32_0 : i32, i32, i32
  }
  func.func @transform_1(%arg0: i32) -> (i32, i32) {
    %c0_i32 = arith.constant 0 : i32
    %c0_i32_0 = arith.constant 0 : i32
    %c0_i32_1 = arith.constant 0 : i32
    return %c0_i32, %c0_i32_0 : i32, i32
  }
  func.func @transform_2(%arg0: i32) -> (i32, i32) {
    %c0_i32 = arith.constant 0 : i32
    %c0_i32_0 = arith.constant 0 : i32
    %c0_i32_1 = arith.constant 0 : i32
    return %c0_i32, %c0_i32_0 : i32, i32
  }
  func.func @transform_3(%arg0: i32) -> (i32, i32, i32) {
    %c0_i32 = arith.constant 0 : i32
    %c0_i32_0 = arith.constant 0 : i32
    %c0_i32_1 = arith.constant 0 : i32
    return %arg0, %c0_i32, %c0_i32_0 : i32, i32, i32
  }
}

</mosaic_0001>

<llo_original>
// kernel: tpu_custom_call.1
$region0: #{tpu_custom_call.1}
  #allocation0 [shape = 'u32[]', space=smem, size = 0x4, offset = 0x4, fixed_abs, tag = 'smem constant byte address 0x4 - core index']
  #allocation1 [shape = 'u32[144,128]{1,0:T(1,128)}', space=vmem, size = 0x12000, scoped, tag = 'internal scratch']
  %s0 = inlined_call_operand.hbm [shape: f32[8,32,256], index: 0, kind: input, shape index: {}]
  %s1 = inlined_call_operand.vmem [shape: f32[32,8], index: 1, kind: input, shape index: {}]
  %s2 = inlined_call_operand.vmem [shape: f32[8,32], index: 2, kind: input, shape index: {}]
  %s3 = inlined_call_operand.hbm [shape: f32[8,32,256], index: 3, kind: output, shape index: {}]
  %s4 = sld [smem:[#allocation0]]
  $region49: #{tpu_custom_call.1} parent=0
    _
  %s6 = ssub.s32 1, %s4
  %s7 = scalar_select 0, %s6, %s4
  $region1: #{tpu_custom_call.1} parent=0
    #allocation2 [shape = 'u8[131072]{0}', space=vmem, size = 0x20000, scoped, tag = 'input window, operand 0']
    #allocation3 [shape = 's32[2]{0}', space=sflag, size = 0x8, scoped, tag = 'scoped memory for tpu_custom_call.1']
    #allocation4 [shape = 's32[2]{0}', space=sflag, size = 0x8, scoped, tag = 'scoped memory for tpu_custom_call.1']
    #allocation5 [shape = 'u8[131072]{0}', space=vmem, size = 0x20000, scoped, tag = 'output window, operand 0']
    %8 = vsyncpa [#allocation3], 0
    %s9 = scalar_lea.sflag [#allocation3], 1
    %10 = vsyncpa %s9, 0
    %11 = vsyncpa [#allocation4], 0
    %s12 = scalar_lea.sflag [#allocation4], 1
    %13 = vsyncpa %s12, 0
    loop: start=0, step=1, limit=6
    $region2: #{tpu_custom_call.1} parent=1 // loop_pre_header
      _
    $region3: #{tpu_custom_call.1} parent=1 // loop_header
      %s15 = sphi 0, %s19
      %p16 = scmp.ge.s32.totalorder %s15, 6
      %s25 = sphi 0, %s27
      %s28 = sphi 0, %s25
      %s29 = sphi 0, %s28
      %s45 = sphi 0, %s29
      %s49 = sphi 0, %s49
      %s51 = sphi 0, %s49
      %s52 = sphi 0, %s51
      %s66 = sphi 0, %s52
      %s70 = sphi 0, %s70
      %s72 = sphi 0, %s70
      %s73 = sphi 0, %s72
      %s87 = sphi 0, %s73
      %s93 = sphi 0, %s95
      %s96 = sphi 0, %s93
      %s97 = sphi 0, %s96
      %s113 = sphi 0, %s97
    $region4: #{tpu_custom_call.1} parent=1 // loop_header_branch
      %18 = sbr.rel (%p16) target = $region8
    $region5: #{tpu_custom_call.1} parent=1 // loop_body
      %s20 = ssub.s32 %s15, 1
      %s21 = ssub.s32 %s15, 2
      %s22 = sadd.s32 %s15, 1
      %s23 = ssub.s32 %s15, %s22
      %p24 = scmp.eq.s32.totalorder %s23, 0
      %s26 = sadd.s32 %s25, 1
      %s27 = scalar_select %p24, %s25, %s26
      %p30 = pneg %p24
      %p31 = scmp.eq.s32.totalorder %s15, 3
      %p32 = por %p30, %p31
      %p33 = scmp.ne.s32.totalorder %s25, %s28
      %p34 = scmp.eq.s32.totalorder %s15, 0
      %p35 = por %p33, %p34
      %p36 = scmp.ne.s32.totalorder %s25, %s28
      %p37 = scmp.eq.s32.totalorder %s20, 3
      %p38 = por %p36, %p37
      %p39 = scmp.ne.s32.totalorder %s28, %s29
      %p40 = scmp.eq.s32.totalorder %s20, 0
      %p41 = por %p39, %p40
      %p42 = scmp.ne.s32.totalorder %s28, %s29
      %p43 = scmp.eq.s32.totalorder %s21, 3
      %p44 = por %p42, %p43
      %p46 = scmp.ne.s32.totalorder %s29, %s45
      %p47 = scmp.eq.s32.totalorder %s21, 0
      %p48 = por %p46, %p47
      %s50 = sadd.s32 %s49, 1
      %p53 = scmp.eq.s32.totalorder %s15, 3
      %p54 = scmp.ne.s32.totalorder %s49, %s51
      %p55 = scmp.eq.s32.totalorder %s15, 0
      %p56 = por %p54, %p55
      %p57 = scmp.ne.s32.totalorder %s49, %s51
      %p58 = scmp.eq.s32.totalorder %s20, 3
      %p59 = por %p57, %p58
      %p60 = scmp.ne.s32.totalorder %s51, %s52
      %p61 = scmp.eq.s32.totalorder %s20, 0
      %p62 = por %p60, %p61
      %p63 = scmp.ne.s32.totalorder %s51, %s52
      %p64 = scmp.eq.s32.totalorder %s21, 3
      %p65 = por %p63, %p64
      %p67 = scmp.ne.s32.totalorder %s52, %s66
      %p68 = scmp.eq.s32.totalorder %s21, 0
      %p69 = por %p67, %p68
      %s71 = sadd.s32 %s70, 1
      %p74 = scmp.eq.s32.totalorder %s15, 3
      %p75 = scmp.ne.s32.totalorder %s70, %s72
      %p76 = scmp.eq.s32.totalorder %s15, 0
      %p77 = por %p75, %p76
      %p78 = scmp.ne.s32.totalorder %s70, %s72
      %p79 = scmp.eq.s32.totalorder %s20, 3
      %p80 = por %p78, %p79
      %p81 = scmp.ne.s32.totalorder %s72, %s73
      %p82 = scmp.eq.s32.totalorder %s20, 0
      %p83 = por %p81, %p82
      %p84 = scmp.ne.s32.totalorder %s72, %s73
      %p85 = scmp.eq.s32.totalorder %s21, 3
      %p86 = por %p84, %p85
      %p88 = scmp.ne.s32.totalorder %s73, %s87
      %p89 = scmp.eq.s32.totalorder %s21, 0
      %p90 = por %p88, %p89
      %s91 = ssub.s32 %s15, %s22
      %p92 = scmp.eq.s32.totalorder %s91, 0
      %s94 = sadd.s32 %s93, 1
      %s95 = scalar_select %p92, %s93, %s94
      %p98 = pneg %p92
      %p99 = scmp.eq.s32.totalorder %s15, 3
      %p100 = por %p98, %p99
      %p101 = scmp.ne.s32.totalorder %s93, %s96
      %p102 = scmp.eq.s32.totalorder %s15, 0
      %p103 = por %p101, %p102
      %p104 = scmp.ne.s32.totalorder %s93, %s96
      %p105 = scmp.eq.s32.totalorder %s20, 3
      %p106 = por %p104, %p105
      %p107 = scmp.ne.s32.totalorder %s96, %s97
      %p108 = scmp.eq.s32.totalorder %s20, 0
      %p109 = por %p107, %p108
      %p110 = scmp.ne.s32.totalorder %s96, %s97
      %p111 = scmp.eq.s32.totalorder %s21, 3
      %p112 = por %p110, %p111
      %p114 = scmp.ne.s32.totalorder %s97, %s113
      %p115 = scmp.eq.s32.totalorder %s21, 0
      %p116 = por %p114, %p115
      %p117 = scmp.le.s32.totalorder 1, %s15
      %p118 = scmp.lt.s32.totalorder %s15, 5
      %p119 = pnand %p117, %p118
      %p120 = pneg %p119
      // Predicated region
      $region9: #{tpu_custom_call.1} parent=5 // pred_check
        _
      $region10: #{tpu_custom_call.1} parent=5 // pred_check_branch
        %122 = sbr.rel (%p119) target = $region12
      $region11: #{tpu_custom_call.1} parent=5 // pred_region
        %s123 = ssub.s32 %s15, 1
        // Predicated region
        $region13: #{tpu_custom_call.1} parent=11 // pred_check
          %p124 = pneg %p62
        $region14: #{tpu_custom_call.1} parent=11 // pred_check_branch
          %126 = sbr.rel (%p124) target = $region16
        $region15: #{tpu_custom_call.1} parent=11 // pred_region
          _
        $region16: #{tpu_custom_call.1} parent=11 // pred_fallthru
          _
        // Predicated region
        $region17: #{tpu_custom_call.1} parent=11 // pred_check
          %p127 = pneg %p83
        $region18: #{tpu_custom_call.1} parent=11 // pred_check_branch
          %129 = sbr.rel (%p127) target = $region20
        $region19: #{tpu_custom_call.1} parent=11 // pred_region
          _
        $region20: #{tpu_custom_call.1} parent=11 // pred_fallthru
          _
      $region12: #{tpu_custom_call.1} parent=5 // pred_fallthru
        _
      %p130 = scmp.lt.s32.totalorder %s15, 4
      // Predicated region
      $region21: #{tpu_custom_call.1} parent=5 // pred_check
        %p131 = pneg %p130
      $region22: #{tpu_custom_call.1} parent=5 // pred_check_branch
        %133 = sbr.rel (%p131) target = $region24
      $region23: #{tpu_custom_call.1} parent=5 // pred_region
        // Predicated region
        $region25: #{tpu_custom_call.1} parent=23 // pred_check
          %p134 = pneg %p35
        $region26: #{tpu_custom_call.1} parent=23 // pred_check_branch
          %136 = sbr.rel (%p134) target = $region28
        $region27: #{tpu_custom_call.1} parent=23 // pred_region
          %s137 = sand.u32 %s25, 1
          %s138 = scalar_lea.sflag [#allocation3], %s137
          %s139 = sand.u32 %s25, 1
          %s140 = smul.addr %s139, 128
          %s141 = scalar_lea.vmem [#allocation2], %s140
          %s142 = smul.u32 2, %s15
          %s144 = ssub.s32 2048, 2048
          %145 = vsyncadd %s138, %s144
          %s146 = smul.addr %s142, 8
          %s147 = smul.addr %s146, 128
          %s148 = scalar_lea.hbm %s0, %s147
          %s149 = sshll.u32 %s141, 4
          %s150 = int_to_ptr.vmem [resolvable:$true] %s149
          %155 = dma.hbm_to_vmem [thread:$0]  %s148, 2048, %s150, %s138, 256, 256, 16
        $region28: #{tpu_custom_call.1} parent=23 // pred_fallthru
          _
      $region24: #{tpu_custom_call.1} parent=5 // pred_fallthru
        _
      %p156 = scmp.le.s32.totalorder 1, %s15
      %p157 = scmp.lt.s32.totalorder %s15, 5
      %p158 = pnand %p156, %p157
      %p159 = pneg %p158
      // Predicated region
      $region29: #{tpu_custom_call.1} parent=5 // pred_check
        _
      $region30: #{tpu_custom_call.1} parent=5 // pred_check_branch
        %161 = sbr.rel (%p158) target = $region32
      $region31: #{tpu_custom_call.1} parent=5 // pred_region
        %s162 = ssub.s32 %s15, 1
        %s163 = sand.u32 %s28, 1
        %s164 = scalar_lea.sflag [#allocation3], %s163
        %s165 = sand.u32 %s28, 1
        %s166 = smul.addr %s165, 128
        %s167 = scalar_lea.vmem [#allocation2], %s166
        // Predicated region
        $region33: #{tpu_custom_call.1} parent=31 // pred_check
          %p168 = pneg %p41
        $region34: #{tpu_custom_call.1} parent=31 // pred_check_branch
          %170 = sbr.rel (%p168) target = $region36
        $region35: #{tpu_custom_call.1} parent=31 // pred_region
          %171 = dma.done %s164, 2048
        $region36: #{tpu_custom_call.1} parent=31 // pred_fallthru
          _
        %s172 = sand.u32 %s28, 1
        %s173 = scalar_lea.sflag [#allocation3], %s172
        %s174 = sand.u32 %s28, 1
        %s175 = smul.addr %s174, 128
        %s176 = scalar_lea.vmem [#allocation2], %s175
        %p177 = pneg %p41
        %p178 = pneg %p38
        %p179 = pneg %p62
        %p180 = pneg %p59
        %p181 = pneg %p83
        %p182 = pneg %p80
        %p183 = pneg %p109
        %p184 = pneg %p106
        %s185 = sand.u32 %s96, 1
        %s186 = scalar_lea.sflag [#allocation4], %s185
        %s187 = sand.u32 %s96, 1
        %s188 = smul.addr %s187, 128
        %s189 = scalar_lea.vmem [#allocation5], %s188
        %s190 = smul.u32 2, %s20
        %s191 = smul.u32 2, %s20
        %v192 = vld [vmem:[%s167] sm:$0xff]
        %v193 = vld [vmem:[%s167 + $0x8] sm:$0xff]
        %v194 = vld [vmem:[%s167 + $0x10] sm:$0xff]
        %v195 = vld [vmem:[%s167 + $0x18] sm:$0xff]
        %v196 = vld [vmem:[%s167 + $0x20] sm:$0xff]
        %v197 = vld [vmem:[%s167 + $0x28] sm:$0xff]
        %v198 = vld [vmem:[%s167 + $0x30] sm:$0xff]
        %v199 = vld [vmem:[%s167 + $0x38] sm:$0xff]
        %v200 = vld [vmem:[%s167 + $0x40] sm:$0xff]
        %v201 = vld [vmem:[%s167 + $0x48] sm:$0xff]
        %v202 = vld [vmem:[%s167 + $0x50] sm:$0xff]
        %v203 = vld [vmem:[%s167 + $0x58] sm:$0xff]
        %v204 = vld [vmem:[%s167 + $0x60] sm:$0xff]
        %v205 = vld [vmem:[%s167 + $0x68] sm:$0xff]
        %v206 = vld [vmem:[%s167 + $0x70] sm:$0xff]
        %v207 = vld [vmem:[%s167 + $0x78] sm:$0xff]
        %v208 = vadd.f32 %v192, %v193
        %209 = vadd.xlane.f32.xlu0 %v208
        %v210 = vpop.xlane.xlu0 %209
        %v211 = vadd.f32 %v194, %v195
        %212 = vadd.xlane.f32.xlu0 %v211
        %v213 = vpop.xlane.xlu0 %212
        %v214 = vadd.f32 %v196, %v197
        %215 = vadd.xlane.f32.xlu0 %v214
        %v216 = vpop.xlane.xlu0 %215
        %v217 = vadd.f32 %v198, %v199
        %218 = vadd.xlane.f32.xlu0 %v217
        %v219 = vpop.xlane.xlu0 %218
        %v220 = vadd.f32 %v200, %v201
        %221 = vadd.xlane.f32.xlu0 %v220
        %v222 = vpop.xlane.xlu0 %221
        %v223 = vadd.f32 %v202, %v203
        %224 = vadd.xlane.f32.xlu0 %v223
        %v225 = vpop.xlane.xlu0 %224
        %v226 = vadd.f32 %v204, %v205
        %227 = vadd.xlane.f32.xlu0 %v226
        %v228 = vpop.xlane.xlu0 %227
        %v229 = vadd.f32 %v206, %v207
        %230 = vadd.xlane.f32.xlu0 %v229
        %v231 = vpop.xlane.xlu0 %230
        %v232 = vmul.f32 %v210, 0.00390625
        %v233 = vmul.f32 %v213, 0.00390625
        %v234 = vmul.f32 %v216, 0.00390625
        %v235 = vmul.f32 %v219, 0.00390625
        %v236 = vmul.f32 %v222, 0.00390625
        %v237 = vmul.f32 %v225, 0.00390625
        %v238 = vmul.f32 %v228, 0.00390625
        %v239 = vmul.f32 %v231, 0.00390625
        %v240 = vld [vmem:[%s1] sm:$0xff]
        %v241 = vld [vmem:[%s1 + $0x8] sm:$0xff]
        %v242 = vld [vmem:[%s1 + $0x10] sm:$0xff]
        %v243 = vld [vmem:[%s1 + $0x18] sm:$0xff]
        %v252 = vlaneseq
        %v253 = vand.u32 %v252, 127
        %v254 = vlaneseq
        %v255 = vshrl.u32 %v254, 7
        %v256 = vsub.s32 %v253, %v255
        %v257 = vrot.slane %v232, %v256
        %v258 = vadd.s32 %v253, 4294967288
        %v259 = vlaneseq
        %v260 = vshrl.u32 %v259, 7
        %v261 = vsub.s32 %v258, %v260
        %v262 = vrot.slane %v233, %v261
        %vm263 = vcmask 130112
        %v264 = vsel %vm263, %v262, %v257
        %v265 = vadd.s32 %v253, 4294967280
        %v266 = vlaneseq
        %v267 = vshrl.u32 %v266, 7
        %v268 = vsub.s32 %v265, %v267
        %v269 = vrot.slane %v234, %v268
        %vm270 = vcmask 195712
        %v271 = vsel %vm270, %v269, %v264
        %v272 = vadd.s32 %v253, 4294967272
        %v273 = vlaneseq
        %v274 = vshrl.u32 %v273, 7
        %v275 = vsub.s32 %v272, %v274
        %v276 = vrot.slane %v235, %v275
        %vm277 = vcmask 261312
        %v278 = vsel %vm277, %v276, %v271
        %v279 = vlaneseq
        %v280 = vshrl.u32 %v279, 7
        %v281 = vsub.s32 %v253, %v280
        %v282 = vrot.slane %v236, %v281
        %v283 = vlaneseq
        %v284 = vshrl.u32 %v283, 7
        %v285 = vsub.s32 %v258, %v284
        %v286 = vrot.slane %v237, %v285
        %v287 = vsel %vm263, %v286, %v282
        %v288 = vlaneseq
        %v289 = vshrl.u32 %v288, 7
        %v290 = vsub.s32 %v265, %v289
        %v291 = vrot.slane %v238, %v290
        %v292 = vsel %vm270, %v291, %v287
        %v293 = vlaneseq
        %v294 = vshrl.u32 %v293, 7
        %v295 = vsub.s32 %v272, %v294
        %v296 = vrot.slane %v239, %v295
        %v297 = vsel %vm277, %v296, %v292
        %vm298 = vcmask 1041409
        %v299 = vsel %vm298, %v297, %v278
        %vm300 = vcmask 261120
        %v301 = vsel %vm300, %v299, 0
        %303 = vmatprep.subr.mxu0 0.0
        %304 = vmatpush1.msra.mxu0 %v240
        %305 = vmatprep.subr.mxu0 0.0
        %306 = vmatpush1.msra.mxu0 %v241
        %307 = vmatprep.subr.mxu0 0.0
        %308 = vmatpush1.msra.mxu0 %v242
        %309 = vmatprep.subr.mxu0 0.0
        %310 = vmatpush1.msra.mxu0 %v243
        %311 = vmatprep.subr.mxu0 0.0
        %312 = vmatpush1.msra.mxu0 0.0
        %313 = vmatprep.subr.mxu0 0.0
        %314 = vmatpush1.msra.mxu0 0.0
        %315 = vmatprep.subr.mxu0 0.0
        %316 = vmatpush1.msra.mxu0 0.0
        %317 = vmatprep.subr.mxu0 0.0
        %318 = vmatpush1.msra.mxu0 0.0
        %319 = vmatprep.subr.mxu0 0.0
        %320 = vmatpush1.msra.mxu0 0.0
        %321 = vmatprep.subr.mxu0 0.0
        %322 = vmatpush1.msra.mxu0 0.0
        %323 = vmatprep.subr.mxu0 0.0
        %324 = vmatpush1.msra.mxu0 0.0
        %325 = vmatprep.subr.mxu0 0.0
        %326 = vmatpush1.msra.mxu0 0.0
        %327 = vmatprep.subr.mxu0 0.0
        %328 = vmatpush1.msra.mxu0 0.0
        %329 = vmatprep.subr.mxu0 0.0
        %330 = vmatpush1.msra.mxu0 0.0
        %331 = vmatprep.subr.mxu0 0.0
        %332 = vmatpush1.msra.mxu0 0.0
        %333 = vmatprep.subr.mxu0 0.0
        %334 = vmatpush1.msra.mxu0 0.0
        %335 = vmatprep.subr.mxu0 0.0
        %336 = vmatpush1.msra.mxu0 0.0
        %337 = vmatprep.subr.mxu0 0.0
        %338 = vmatpush1.msra.mxu0 0.0
        %339 = vmatprep.subr.mxu0 0.0
        %340 = vmatpush1.msra.mxu0 0.0
        %341 = vmatprep.subr.mxu0 0.0
        %342 = vmatpush1.msra.mxu0 0.0
        %343 = vmatprep.subr.mxu0 0.0
        %344 = vmatpush1.msra.mxu0 0.0
        %345 = vmatprep.subr.mxu0 0.0
        %346 = vmatpush1.msra.mxu0 0.0
        %347 = vmatprep.subr.mxu0 0.0
        %348 = vmatpush1.msra.mxu0 0.0
        %349 = vmatprep.subr.mxu0 0.0
        %350 = vmatpush1.msra.mxu0 0.0
        %351 = vmatprep.subr.mxu0 0.0
        %352 = vmatpush1.msra.mxu0 0.0
        %353 = vmatprep.subr.mxu0 0.0
        %354 = vmatpush1.msra.mxu0 0.0
        %355 = vmatprep.subr.mxu0 0.0
        %356 = vmatpush1.msra.mxu0 0.0
        %357 = vmatprep.subr.mxu0 0.0
        %358 = vmatpush1.msra.mxu0 0.0
        %359 = vmatprep.subr.mxu0 0.0
        %360 = vmatpush1.msra.mxu0 0.0
        %361 = vmatprep.subr.mxu0 0.0
        %362 = vmatpush1.msra.mxu0 0.0
        %363 = vmatprep.subr.mxu0 0.0
        %364 = vmatpush1.msra.mxu0 0.0
        %365 = vmatprep.subr.mxu0 0.0
        %366 = vmatpush1.msra.mxu0 0.0
        %367 = vmatprep.mubr.f32.mxu0 0.0
        %368 = vmatmul.mubr.f32.gmra.mrb[0].mxu0 %v301
        %v369 = vpop.f32.mrb[0].mxu0
        %v370 = vadd.f32 0.0, %v369
        %v371 = vpop.f32.mrb[0].mxu0
        %372 = vdwg.mxu0
        %v373 = vmax.f32 %v370, 0.0
        %v374 = vld [vmem:[%s2] sm:$0xff]
        %vm375 = vcmask 64512
        %v377 = vsel %vm375, %v373, 0
        %379 = vmatprep.subr.mxu0 0.0
        %380 = vmatpush1.msra.mxu0 %v374
        %381 = vmatprep.subr.mxu0 0.0
        %382 = vmatpush1.msra.mxu0 0.0
        %383 = vmatprep.subr.mxu0 0.0
        %384 = vmatpush1.msra.mxu0 0.0
        %385 = vmatprep.subr.mxu0 0.0
        %386 = vmatpush1.msra.mxu0 0.0
        %387 = vmatprep.subr.mxu0 0.0
        %388 = vmatpush1.msra.mxu0 0.0
        %389 = vmatprep.subr.mxu0 0.0
        %390 = vmatpush1.msra.mxu0 0.0
        %391 = vmatprep.subr.mxu0 0.0
        %392 = vmatpush1.msra.mxu0 0.0
        %393 = vmatprep.subr.mxu0 0.0
        %394 = vmatpush1.msra.mxu0 0.0
        %395 = vmatprep.subr.mxu0 0.0
        %396 = vmatpush1.msra.mxu0 0.0
        %397 = vmatprep.subr.mxu0 0.0
        %398 = vmatpush1.msra.mxu0 0.0
        %399 = vmatprep.subr.mxu0 0.0
        %400 = vmatpush1.msra.mxu0 0.0
        %401 = vmatprep.subr.mxu0 0.0
        %402 = vmatpush1.msra.mxu0 0.0
        %403 = vmatprep.subr.mxu0 0.0
        %404 = vmatpush1.msra.mxu0 0.0
        %405 = vmatprep.subr.mxu0 0.0
        %406 = vmatpush1.msra.mxu0 0.0
        %407 = vmatprep.subr.mxu0 0.0
        %408 = vmatpush1.msra.mxu0 0.0
        %409 = vmatprep.subr.mxu0 0.0
        %410 = vmatpush1.msra.mxu0 0.0
        %411 = vmatprep.subr.mxu0 0.0
        %412 = vmatpush1.msra.mxu0 0.0
        %413 = vmatprep.subr.mxu0 0.0
        %414 = vmatpush1.msra.mxu0 0.0
        %415 = vmatprep.subr.mxu0 0.0
        %416 = vmatpush1.msra.mxu0 0.0
        %417 = vmatprep.subr.mxu0 0.0
        %418 = vmatpush1.msra.mxu0 0.0
        %419 = vmatprep.subr.mxu0 0.0
        %420 = vmatpush1.msra.mxu0 0.0
        %421 = vmatprep.subr.mxu0 0.0
        %422 = vmatpush1.msra.mxu0 0.0
        %423 = vmatprep.subr.mxu0 0.0
        %424 = vmatpush1.msra.mxu0 0.0
        %425 = vmatprep.subr.mxu0 0.0
        %426 = vmatpush1.msra.mxu0 0.0
        %427 = vmatprep.subr.mxu0 0.0
        %428 = vmatpush1.msra.mxu0 0.0
        %429 = vmatprep.subr.mxu0 0.0
        %430 = vmatpush1.msra.mxu0 0.0
        %431 = vmatprep.subr.mxu0 0.0
        %432 = vmatpush1.msra.mxu0 0.0
        %433 = vmatprep.subr.mxu0 0.0
        %434 = vmatpush1.msra.mxu0 0.0
        %435 = vmatprep.subr.mxu0 0.0
        %436 = vmatpush1.msra.mxu0 0.0
        %437 = vmatprep.subr.mxu0 0.0
        %438 = vmatpush1.msra.mxu0 0.0
        %439 = vmatprep.subr.mxu0 0.0
        %440 = vmatpush1.msra.mxu0 0.0
        %441 = vmatprep.subr.mxu0 0.0
        %442 = vmatpush1.msra.mxu0 0.0
        %443 = vmatprep.mubr.f32.mxu0 0.0
        %444 = vmatmul.mubr.f32.gmra.mrb[0].mxu0 %v377
        %v445 = vpop.f32.mrb[0].mxu0
        %v446 = vadd.f32 0.0, %v445
        %v447 = vpop.f32.mrb[0].mxu0
        %448 = vdwg.mxu0
        %v449 = vxor.u32 %v446, 2147483648
        %v450 = vmul.f32 %v449, 1.442695
        %v451 = vpow.pop %v450
        %v452 = vadd.f32 %v451, 1.0
        %v453 = vrcp.pop %v452
        %v454 = vmul.f32 1.0, %v453
        %v455 = vlaneseq
        %v456 = vshrl.u32 %v455, 7
        %v457 = vsub.s32 0, %v456
        %v458 = vrot.slane %v454, %v457
        %460 = vbcast.lane.b32.xlu0 %v458, 256
        %v461 = vpop.permute.xlu0 %460
        %s463 = sor.u32 256, 8
        %464 = vbcast.lane.b32.xlu0 %v458, %s463
        %v465 = vpop.permute.xlu0 %464
        %s467 = sor.u32 256, 16
        %468 = vbcast.lane.b32.xlu0 %v458, %s467
        %v469 = vpop.permute.xlu0 %468
        %s471 = sor.u32 256, 24
        %472 = vbcast.lane.b32.xlu0 %v458, %s471
        %v473 = vpop.permute.xlu0 %472
        %v474 = vlaneseq
        %v475 = vshrl.u32 %v474, 7
        %v476 = vsub.s32 1, %v475
        %v477 = vrot.slane %v454, %v476
        %479 = vbcast.lane.b32.xlu0 %v477, 256
        %v480 = vpop.permute.xlu0 %479
        %s482 = sor.u32 256, 8
        %483 = vbcast.lane.b32.xlu0 %v477, %s482
        %v484 = vpop.permute.xlu0 %483
        %s486 = sor.u32 256, 16
        %487 = vbcast.lane.b32.xlu0 %v477, %s486
        %v488 = vpop.permute.xlu0 %487
        %s490 = sor.u32 256, 24
        %491 = vbcast.lane.b32.xlu0 %v477, %s490
        %v492 = vpop.permute.xlu0 %491
        %v493 = vmul.f32 %v192, %v461
        %v494 = vmul.f32 %v193, %v461
        %v495 = vmul.f32 %v194, %v465
        %v496 = vmul.f32 %v195, %v465
        %v497 = vmul.f32 %v196, %v469
        %v498 = vmul.f32 %v197, %v469
        %v499 = vmul.f32 %v198, %v473
        %v500 = vmul.f32 %v199, %v473
        %v501 = vmul.f32 %v200, %v480
        %v502 = vmul.f32 %v201, %v480
        %v503 = vmul.f32 %v202, %v484
        %v504 = vmul.f32 %v203, %v484
        %v505 = vmul.f32 %v204, %v488
        %v506 = vmul.f32 %v205, %v488
        %v507 = vmul.f32 %v206, %v492
        %v508 = vmul.f32 %v207, %v492
        %509 = vst [vmem:[%s189] sm:$0xff] %v493
        %510 = vst [vmem:[%s189 + $0x8] sm:$0xff] %v494
        %511 = vst [vmem:[%s189 + $0x10] sm:$0xff] %v495
        %512 = vst [vmem:[%s189 + $0x18] sm:$0xff] %v496
        %513 = vst [vmem:[%s189 + $0x20] sm:$0xff] %v497
        %514 = vst [vmem:[%s189 + $0x28] sm:$0xff] %v498
        %515 = vst [vmem:[%s189 + $0x30] sm:$0xff] %v499
        %516 = vst [vmem:[%s189 + $0x38] sm:$0xff] %v500
        %517 = vst [vmem:[%s189 + $0x40] sm:$0xff] %v501
        %518 = vst [vmem:[%s189 + $0x48] sm:$0xff] %v502
        %519 = vst [vmem:[%s189 + $0x50] sm:$0xff] %v503
        %520 = vst [vmem:[%s189 + $0x58] sm:$0xff] %v504
        %521 = vst [vmem:[%s189 + $0x60] sm:$0xff] %v505
        %522 = vst [vmem:[%s189 + $0x68] sm:$0xff] %v506
        %523 = vst [vmem:[%s189 + $0x70] sm:$0xff] %v507
        %524 = vst [vmem:[%s189 + $0x78] sm:$0xff] %v508
        %s525 = sand.u32 %s96, 1
        %s526 = scalar_lea.sflag [#allocation4], %s525
        %s527 = sand.u32 %s96, 1
        %s528 = smul.addr %s527, 128
        %s529 = scalar_lea.vmem [#allocation5], %s528
        // Predicated region
        $region37: #{tpu_custom_call.1} parent=31 // pred_check
          %p530 = pneg %p106
        $region38: #{tpu_custom_call.1} parent=31 // pred_check_branch
          %532 = sbr.rel (%p530) target = $region40
        $region39: #{tpu_custom_call.1} parent=31 // pred_region
          %s533 = smul.u32 2, %s20
          %s535 = ssub.s32 2048, 2048
          %536 = vsyncadd %s526, %s535
          %s537 = smul.addr %s533, 8
          %s538 = smul.addr %s537, 128
          %s539 = scalar_lea.hbm %s3, %s538
          %s540 = sshll.u32 %s529, 4
          %s541 = int_to_ptr.vmem [resolvable:$true] %s540
          %546 = dma.vmem_to_hbm [thread:$0]  %s541, 2048, %s539, %s526, 256, 256, 16
        $region40: #{tpu_custom_call.1} parent=31 // pred_fallthru
          _
      $region32: #{tpu_custom_call.1} parent=5 // pred_fallthru
        _
      %p547 = scmp.le.s32.totalorder 2, %s15
      // Predicated region
      $region41: #{tpu_custom_call.1} parent=5 // pred_check
        %p548 = pneg %p547
      $region42: #{tpu_custom_call.1} parent=5 // pred_check_branch
        %550 = sbr.rel (%p548) target = $region44
      $region43: #{tpu_custom_call.1} parent=5 // pred_region
        %s551 = ssub.s32 %s15, 2
        // Predicated region
        $region45: #{tpu_custom_call.1} parent=43 // pred_check
          %p552 = pneg %p112
        $region46: #{tpu_custom_call.1} parent=43 // pred_check_branch
          %554 = sbr.rel (%p552) target = $region48
        $region47: #{tpu_custom_call.1} parent=43 // pred_region
          %s555 = sand.u32 %s97, 1
          %s556 = scalar_lea.sflag [#allocation4], %s555
          %s557 = sand.u32 %s97, 1
          %s558 = smul.addr %s557, 128
          %s559 = scalar_lea.vmem [#allocation5], %s558
          %560 = dma.done %s556, 2048
        $region48: #{tpu_custom_call.1} parent=43 // pred_fallthru
          _
      $region44: #{tpu_custom_call.1} parent=5 // pred_fallthru
        _
    $region6: #{tpu_custom_call.1} parent=1 // loop_footer
      %s19 = sadd.s32 1, %s15
    $region7: #{tpu_custom_call.1} parent=1 // loop_footer_branch
      %14 = sbr.rel target = $region3
    $region8: #{tpu_custom_call.1} parent=1 // loop_exit
      _
    %561 = vsyncpa [#allocation3], 1
    %s562 = scalar_lea.sflag [#allocation3], 1
    %563 = vsyncpa %s562, 1
    %564 = vsyncpa [#allocation4], 1
    %s565 = scalar_lea.sflag [#allocation4], 1
    %566 = vsyncpa %s565, 1

</llo_original>
